<compile_context>
chip_gen: v7x
topology: tpu7x:2x2x1
jax: 0.10.0
libtpu: 0.0.40
codegen_flags: <defaults>
</compile_context>

<pallas_src>
import functools

import jax
import jax.numpy as jnp
from jax import lax
from jax.experimental import pallas as pl
from jax.experimental.pallas import tpu as pltpu


def _scf_kernel(H, W, nf, PAD,
                xs_ref,                      # SMEM (1,): x_scale
                masks_ref,                   # VMEM (2, HW): [col>=1, col<=W-2] as f32
                x1_ref, x2_ref,              # VMEM (nf, HW) each
                wxa_ref, wxb_ref, bx_ref,    # (13nf, nf), (13nf, nf), (13nf, 1)
                w2_ref, b2_ref,              # (nf, 12nf), (nf, 1)
                w3_ref, b3_ref,              # (nf, 9nf) [res_scale folded], (nf, 1)
                out_ref):                    # (nf, HW)
    HW = H * W
    C1 = 12 * nf                             # body-branch row count (multiple of 8)

    x1 = x1_ref[...]
    x2 = x2_ref[...]

    # --- Fused first stage: the 1x1 convs over concat([s1*x1, s2*x2]) of BOTH
    #     the body path (conv1x1 -> ReLU) and the skip path (conv1x1 -> BN ->
    #     ReLU) are stacked into one weight per input.  The channel concat is
    #     folded into split weights (s1*W[:, :nf], s2*W[:, nf:]) in the wrapper.
    pre = (jnp.dot(wxa_ref[...], x1, preferred_element_type=jnp.float32)
           + jnp.dot(wxb_ref[...], x2, preferred_element_type=jnp.float32)
           + bx_ref[...])
    act = jnp.maximum(pre, 0.0)
    h1 = act[:C1, :]                         # (12nf, HW) body path; sublane-aligned split
    skip = act[C1:, :]                       # (nf, HW)   skip path (BN folded into WXa/WXb/BX)

    # --- body: second 1x1 conv
    h2 = jnp.dot(w2_ref[...], h1, preferred_element_type=jnp.float32) + b2_ref[...]

    # --- body: 3x3 conv (padding=1) as ONE im2col matmul.
    #     Zero-pad the flattened spatial (lane) axis by PAD lanes on each side
    #     so vertical (dy) taps read zeros outside the image; the horizontal
    #     wrap at row boundaries is removed with two precomputed column masks.
    zpad = jnp.zeros((nf, PAD), jnp.float32)
    padded = jnp.concatenate([zpad, h2, zpad], axis=1)       # (nf, PAD + HW + PAD)
    mask_l = masks_ref[0:1, :]                               # 1.0 where col >= 1
    mask_r = masks_ref[1:2, :]                               # 1.0 where col <= W-2
    taps = []
    for dy in (-1, 0, 1):
        for dx in (-1, 0, 1):
            d = dy * W + dx
            tap = padded[:, PAD + d:PAD + d + HW]            # (nf, HW) static lane slice
            if dx == -1:
                tap = tap * mask_l
            elif dx == 1:
                tap = tap * mask_r
            taps.append(tap)
    slab = jnp.concatenate(taps, axis=0)                     # (9*nf, HW) im2col slab
    body = (jnp.dot(w3_ref[...], slab, preferred_element_type=jnp.float32)
            + b3_ref[...])                                   # res_scale already folded

    out_ref[...] = body + xs_ref[0] * skip


def scf_pallas(x1, x2, kp, H, W, nf):
    """x1, x2: (B, nf, H*W) f32.  Returns (B, nf, H*W) f32."""
    B, _, HW = x1.shape
    PAD = ((W + 1 + 127) // 128) * 128        # lane-aligned halo, >= W+1

    # Row-boundary column masks for the dx = -1 / +1 taps (precomputed once).
    col = jnp.arange(HW, dtype=jnp.int32) % W
    masks = jnp.stack([(col >= 1), (col <= W - 2)], axis=0).astype(jnp.float32)

    def full(a):
        nd = a.ndim
        return pl.BlockSpec(a.shape, lambda b, nd=nd: (0,) * nd)

    x_spec = pl.BlockSpec((None, nf, HW), lambda b: (b, 0, 0))

    grid_spec = pltpu.PrefetchScalarGridSpec(
        num_scalar_prefetch=0,
        grid=(B,),
        in_specs=[
            pl.BlockSpec(memory_space=pltpu.MemorySpace.SMEM),   # x_scale
            full(masks),                                         # column masks
            x_spec, x_spec,                                      # x1, x2
            full(kp["WXa"]), full(kp["WXb"]), full(kp["BX"]),
            full(kp["W2"]), full(kp["B2"]),
            full(kp["W3"]), full(kp["B3"]),
        ],
        out_specs=pl.BlockSpec((None, nf, HW), lambda b: (b, 0, 0)),
    )

    kernel = functools.partial(_scf_kernel, H, W, nf, PAD)
    return pl.pallas_call(
        kernel,
        out_shape=jax.ShapeDtypeStruct((B, nf, HW), jnp.float32),
        grid_spec=grid_spec,
        compiler_params=pltpu.CompilerParams(dimension_semantics=("parallel",)),
    )(kp["xscale"], masks, x1, x2,
      kp["WXa"], kp["WXb"], kp["BX"],
      kp["W2"], kp["B2"],
      kp["W3"], kp["B3"])


def scf_forward(inp1, inp2, kp, nf):
    """NCHW (B, nf, H, W) in -> NCHW (B, nf, H, W) out (folded kernel params)."""
    B, c, H, W = inp1.shape
    assert c == nf and inp2.shape == inp1.shape
    x1 = inp1.reshape(B, nf, H * W)
    x2 = inp2.reshape(B, nf, H * W)
    out = scf_pallas(x1, x2, kp, H, W, nf)
    return out.reshape(B, nf, H, W)


def init_module_params(key, nf):
    """Deterministic synthetic parameters matching the PyTorch module's shapes."""
    C = 2 * nf          # WCRW n_feats
    C6 = 6 * C
    Ch = C // 2         # == nf (output channels)
    ks = jax.random.split(key, 14)

    def wn_conv(kv, kg, oc, ic, kh, kw):
        # weight_norm: w = g * v / ||v||, norm over (in, kh, kw)
        v = 0.2 * jax.random.normal(kv, (oc, ic, kh, kw), jnp.float32)
        g = jax.random.uniform(kg, (oc,), jnp.float32, 0.5, 1.5)
        n = jnp.sqrt(jnp.sum(v * v, axis=(1, 2, 3), keepdims=True))
        return g[:, None, None, None] * v / n

    return {
        "w1": wn_conv(ks[0], ks[1], C6, C, 1, 1),
        "b1": 0.1 * jax.random.normal(ks[2], (C6,), jnp.float32),
        "w2": wn_conv(ks[3], ks[4], Ch, C6, 1, 1),
        "b2": 0.1 * jax.random.normal(ks[5], (Ch,), jnp.float32),
        "w3": wn_conv(ks[6], ks[7], Ch, Ch, 3, 3),
        "b3": 0.1 * jax.random.normal(ks[8], (Ch,), jnp.float32),
        "wc": 0.2 * jax.random.normal(ks[9], (Ch, C, 1, 1), jnp.float32),  # bias=False
        "gamma": jax.random.uniform(ks[10], (Ch,), jnp.float32, 0.5, 1.5),
        "beta": 0.1 * jax.random.normal(ks[11], (Ch,), jnp.float32),
        "rmean": 0.1 * jax.random.normal(ks[12], (Ch,), jnp.float32),
        "rvar": jax.random.uniform(ks[13], (Ch,), jnp.float32, 0.5, 1.5),
        "s1": jnp.float32(0.9), "s2": jnp.float32(1.1),
        "res_scale": jnp.float32(0.8), "x_scale": jnp.float32(1.2),
    }


def fold_kernel_params(mp, nf):
    """Fold weight-norm'd weights, input scales, BN (inference) and res_scale
    into kernel-ready (out_ch, in_ch)-oriented matrices.  The body first conv
    and the skip conv are stacked into single per-input matrices."""
    eps = 1e-5
    bn_scale = mp["gamma"] / jnp.sqrt(mp["rvar"] + eps)          # (nf,)
    bn_bias = mp["beta"] - mp["rmean"] * bn_scale                # (nf,)
    w1 = mp["w1"][:, :, 0, 0]                                    # (12nf, 2nf)
    wc = mp["wc"][:, :, 0, 0]                                    # (nf, 2nf)
    rs = mp["res_scale"]
    W1a = mp["s1"] * w1[:, :nf]                                  # (12nf, nf)
    W1b = mp["s2"] * w1[:, nf:]
    WCa = bn_scale[:, None] * (mp["s1"] * wc[:, :nf])            # (nf, nf)
    WCb = bn_scale[:, None] * (mp["s2"] * wc[:, nf:])
    return {
        "WXa": jnp.concatenate([W1a, WCa], axis=0),              # (13nf, nf)
        "WXb": jnp.concatenate([W1b, WCb], axis=0),              # (13nf, nf)
        "BX": jnp.concatenate([mp["b1"], bn_bias], axis=0)[:, None],   # (13nf, 1)
        "W2": mp["w2"][:, :, 0, 0],                              # (nf, 12nf)
        "B2": mp["b2"][:, None],
        # (out, in, ky, kx) -> (out, ky, kx, in) -> (out, 9*in); tap t = ky*3+kx
        "W3": rs * jnp.transpose(mp["w3"], (0, 2, 3, 1)).reshape(nf, 9 * nf),
        "B3": rs * mp["b3"][:, None],
        "xscale": jnp.reshape(mp["x_scale"], (1,)),
    }


def ref_forward(inp1, inp2, mp, nf):
    """Pure-JAX reference (NCHW in/out) mirroring the PyTorch forward."""
    hp = lax.Precision.HIGHEST
    x1 = jnp.transpose(inp1, (0, 2, 3, 1))
    x2 = jnp.transpose(inp2, (0, 2, 3, 1))
    inp = jnp.concatenate([x1 * mp["s1"], x2 * mp["s2"]], axis=-1)
    w1 = mp["w1"][:, :, 0, 0]
    h1 = jax.nn.relu(jnp.einsum("bhwc,oc->bhwo", inp, w1, precision=hp) + mp["b1"])
    w2 = mp["w2"][:, :, 0, 0]
    h2 = jnp.einsum("bhwc,oc->bhwo", h1, w2, precision=hp) + mp["b2"]
    w3_hwio = jnp.transpose(mp["w3"], (2, 3, 1, 0))
    h3 = lax.conv_general_dilated(h2, w3_hwio, (1, 1), "SAME",
                                  dimension_numbers=("NHWC", "HWIO", "NHWC"),
                                  precision=hp) + mp["b3"]
    bn_scale = mp["gamma"] / jnp.sqrt(mp["rvar"] + 1e-5)
    bn_bias = mp["beta"] - mp["rmean"] * bn_scale
    wc = mp["wc"][:, :, 0, 0]
    sk = jax.nn.relu(jnp.einsum("bhwc,oc->bhwo", inp, wc, precision=hp) * bn_scale
                     + bn_bias)
    out = mp["res_scale"] * h3 + mp["x_scale"] * sk
    return jnp.transpose(out, (0, 3, 1, 2))


if __name__ == "__main__":
    B, nf, H, W = 2, 4, 16, 16
    key = jax.random.PRNGKey(0)
    k1, k2, kparam = jax.random.split(key, 3)
    inp1 = jax.random.normal(k1, (B, nf, H, W), jnp.float32)
    inp2 = jax.random.normal(k2, (B, nf, H, W), jnp.float32)

    module_params = init_module_params(kparam, nf)
    kernel_params = fold_kernel_params(module_params, nf)

    out = scf_forward(inp1, inp2, kernel_params, nf)
    out = jax.block_until_ready(out)
    assert out.shape == (B, nf, H, W), out.shape

    ref = ref_forward(inp1, inp2, module_params, nf)
    rel_err = float(jnp.max(jnp.abs(out - ref)) / (jnp.max(jnp.abs(ref)) + 1e-8))
    assert rel_err < 5e-3, f"kernel/reference mismatch: rel_err={rel_err}"

    print("KERNEL_OK")
</pallas_src>

<mosaic_0001>
module attributes {stable_mosaic.version = 11 : i64} {
  func.func @_scf_kernel(%arg0: i32, %arg1: memref<1xf32, #tpu.memory_space<smem>>, %arg2: memref<2x256xf32, #tpu.memory_space<vmem>>, %arg3: memref<1x4x256xf32, #tpu.memory_space<vmem>>, %arg4: memref<1x4x256xf32, #tpu.memory_space<vmem>>, %arg5: memref<52x4xf32, #tpu.memory_space<vmem>>, %arg6: memref<52x4xf32, #tpu.memory_space<vmem>>, %arg7: memref<52x1xf32, #tpu.memory_space<vmem>>, %arg8: memref<4x48xf32, #tpu.memory_space<vmem>>, %arg9: memref<4x1xf32, #tpu.memory_space<vmem>>, %arg10: memref<4x36xf32, #tpu.memory_space<vmem>>, %arg11: memref<4x1xf32, #tpu.memory_space<vmem>>, %arg12: memref<1x4x256xf32, #tpu.memory_space<vmem>>) attributes {dimension_semantics = [#tpu.dimension_semantics<parallel>], iteration_bounds = array<i64: 2>, scalar_prefetch = 0 : i64, scratch_operands = 0 : i64, tpu.core_type = #tpu.core_type<tc>, window_params = [{transform_indices = @transform_0, window_bounds = array<i64: 1>}, {pipeline_mode = #tpu.pipeline_mode<synchronous>, transform_indices = @transform_1, window_bounds = array<i64: 2, 256>}, {transform_indices = @transform_2, window_bounds = array<i64: 1, 4, 256>}, {transform_indices = @transform_3, window_bounds = array<i64: 1, 4, 256>}, {pipeline_mode = #tpu.pipeline_mode<synchronous>, transform_indices = @transform_4, window_bounds = array<i64: 52, 4>}, {pipeline_mode = #tpu.pipeline_mode<synchronous>, transform_indices = @transform_5, window_bounds = array<i64: 52, 4>}, {pipeline_mode = #tpu.pipeline_mode<synchronous>, transform_indices = @transform_6, window_bounds = array<i64: 52, 1>}, {pipeline_mode = #tpu.pipeline_mode<synchronous>, transform_indices = @transform_7, window_bounds = array<i64: 4, 48>}, {pipeline_mode = #tpu.pipeline_mode<synchronous>, transform_indices = @transform_8, window_bounds = array<i64: 4, 1>}, {pipeline_mode = #tpu.pipeline_mode<synchronous>, transform_indices = @transform_9, window_bounds = array<i64: 4, 36>}, {pipeline_mode = #tpu.pipeline_mode<synchronous>, transform_indices = @transform_10, window_bounds = array<i64: 4, 1>}, {transform_indices = @transform_11, window_bounds = array<i64: 1, 4, 256>}]} {
    %c0 = arith.constant 0 : index
    %c0_0 = arith.constant 0 : index
    %c0_1 = arith.constant 0 : index
    %0 = vector.load %arg3[%c0, %c0_0, %c0_1] : memref<1x4x256xf32, #tpu.memory_space<vmem>>, vector<1x4x256xf32>
    %1 = vector.shape_cast %0 : vector<1x4x256xf32> to vector<4x256xf32>
    %c0_2 = arith.constant 0 : index
    %c0_3 = arith.constant 0 : index
    %c0_4 = arith.constant 0 : index
    %2 = vector.load %arg4[%c0_2, %c0_3, %c0_4] : memref<1x4x256xf32, #tpu.memory_space<vmem>>, vector<1x4x256xf32>
    %3 = vector.shape_cast %2 : vector<1x4x256xf32> to vector<4x256xf32>
    %c0_5 = arith.constant 0 : index
    %c0_6 = arith.constant 0 : index
    %4 = vector.load %arg5[%c0_5, %c0_6] : memref<52x4xf32, #tpu.memory_space<vmem>>, vector<52x4xf32>
    %cst = arith.constant dense<0.000000e+00> : vector<52x256xf32>
    %5 = tpu.matmul %4, %1, %cst {dimension_numbers = #tpu.dot_dimension_numbers<[1], [0], [0], [1], [0, 0, 1, 1], [], []>} : vector<52x4xf32>, vector<4x256xf32>, vector<52x256xf32> -> vector<52x256xf32>
    %c0_7 = arith.constant 0 : index
    %c0_8 = arith.constant 0 : index
    %6 = vector.load %arg6[%c0_7, %c0_8] : memref<52x4xf32, #tpu.memory_space<vmem>>, vector<52x4xf32>
    %cst_9 = arith.constant dense<0.000000e+00> : vector<52x256xf32>
    %7 = tpu.matmul %6, %3, %cst_9 {dimension_numbers = #tpu.dot_dimension_numbers<[1], [0], [0], [1], [0, 0, 1, 1], [], []>} : vector<52x4xf32>, vector<4x256xf32>, vector<52x256xf32> -> vector<52x256xf32>
    %8 = arith.addf %5, %7 : vector<52x256xf32>
    %c0_10 = arith.constant 0 : index
    %c0_11 = arith.constant 0 : index
    %9 = vector.load %arg7[%c0_10, %c0_11] : memref<52x1xf32, #tpu.memory_space<vmem>>, vector<52x1xf32>
    %10 = vector.broadcast %9 : vector<52x1xf32> to vector<52x256xf32>
    %11 = arith.addf %8, %10 : vector<52x256xf32>
    %cst_12 = arith.constant 0.000000e+00 : f32
    %12 = vector.broadcast %cst_12 : f32 to vector<52x256xf32>
    %13 = arith.maximumf %11, %12 : vector<52x256xf32>
    %14 = vector.extract_strided_slice %13 {offsets = [0, 0], sizes = [48, 256], strides = [1, 1]} : vector<52x256xf32> to vector<48x256xf32>
    %15 = vector.extract_strided_slice %13 {offsets = [48, 0], sizes = [4, 256], strides = [1, 1]} : vector<52x256xf32> to vector<4x256xf32>
    %c0_13 = arith.constant 0 : index
    %c0_14 = arith.constant 0 : index
    %16 = vector.load %arg8[%c0_13, %c0_14] : memref<4x48xf32, #tpu.memory_space<vmem>>, vector<4x48xf32>
    %cst_15 = arith.constant dense<0.000000e+00> : vector<4x256xf32>
    %17 = tpu.matmul %16, %14, %cst_15 {dimension_numbers = #tpu.dot_dimension_numbers<[1], [0], [0], [1], [0, 0, 1, 1], [], []>} : vector<4x48xf32>, vector<48x256xf32>, vector<4x256xf32> -> vector<4x256xf32>
    %c0_16 = arith.constant 0 : index
    %c0_17 = arith.constant 0 : index
    %18 = vector.load %arg9[%c0_16, %c0_17] : memref<4x1xf32, #tpu.memory_space<vmem>>, vector<4x1xf32>
    %19 = vector.broadcast %18 : vector<4x1xf32> to vector<4x256xf32>
    %20 = arith.addf %17, %19 : vector<4x256xf32>
    %cst_18 = arith.constant 0.000000e+00 : f32
    %21 = vector.broadcast %cst_18 : f32 to vector<4x128xf32>
    %22 = tpu.concatenate %21, %20, %21 in 1 : vector<4x128xf32>, vector<4x256xf32>, vector<4x128xf32> -> vector<4x512xf32>
    %c0_19 = arith.constant 0 : index
    %c0_20 = arith.constant 0 : index
    %23 = vector.load %arg2[%c0_19, %c0_20] : memref<2x256xf32, #tpu.memory_space<vmem>>, vector<1x256xf32>
    %c1 = arith.constant 1 : index
    %c0_21 = arith.constant 0 : index
    %24 = vector.load %arg2[%c1, %c0_21] : memref<2x256xf32, #tpu.memory_space<vmem>>, vector<1x256xf32>
    %25 = vector.extract_strided_slice %22 {offsets = [0, 111], sizes = [4, 256], strides = [1, 1]} : vector<4x512xf32> to vector<4x256xf32>
    %26 = vector.broadcast %23 : vector<1x256xf32> to vector<4x256xf32>
    %27 = arith.mulf %25, %26 : vector<4x256xf32>
    %28 = vector.extract_strided_slice %22 {offsets = [0, 112], sizes = [4, 256], strides = [1, 1]} : vector<4x512xf32> to vector<4x256xf32>
    %29 = vector.extract_strided_slice %22 {offsets = [0, 113], sizes = [4, 256], strides = [1, 1]} : vector<4x512xf32> to vector<4x256xf32>
    %30 = vector.broadcast %24 : vector<1x256xf32> to vector<4x256xf32>
    %31 = arith.mulf %29, %30 : vector<4x256xf32>
    %32 = vector.extract_strided_slice %22 {offsets = [0, 127], sizes = [4, 256], strides = [1, 1]} : vector<4x512xf32> to vector<4x256xf32>
    %33 = vector.broadcast %23 : vector<1x256xf32> to vector<4x256xf32>
    %34 = arith.mulf %32, %33 : vector<4x256xf32>
    %35 = vector.extract_strided_slice %22 {offsets = [0, 128], sizes = [4, 256], strides = [1, 1]} : vector<4x512xf32> to vector<4x256xf32>
    %36 = vector.extract_strided_slice %22 {offsets = [0, 129], sizes = [4, 256], strides = [1, 1]} : vector<4x512xf32> to vector<4x256xf32>
    %37 = vector.broadcast %24 : vector<1x256xf32> to vector<4x256xf32>
    %38 = arith.mulf %36, %37 : vector<4x256xf32>
    %39 = vector.extract_strided_slice %22 {offsets = [0, 143], sizes = [4, 256], strides = [1, 1]} : vector<4x512xf32> to vector<4x256xf32>
    %40 = vector.broadcast %23 : vector<1x256xf32> to vector<4x256xf32>
    %41 = arith.mulf %39, %40 : vector<4x256xf32>
    %42 = vector.extract_strided_slice %22 {offsets = [0, 144], sizes = [4, 256], strides = [1, 1]} : vector<4x512xf32> to vector<4x256xf32>
    %43 = vector.extract_strided_slice %22 {offsets = [0, 145], sizes = [4, 256], strides = [1, 1]} : vector<4x512xf32> to vector<4x256xf32>
    %44 = vector.broadcast %24 : vector<1x256xf32> to vector<4x256xf32>
    %45 = arith.mulf %43, %44 : vector<4x256xf32>
    %46 = tpu.concatenate %27, %28, %31, %34, %35, %38, %41, %42, %45 in 0 : vector<4x256xf32>, vector<4x256xf32>, vector<4x256xf32>, vector<4x256xf32>, vector<4x256xf32>, vector<4x256xf32>, vector<4x256xf32>, vector<4x256xf32>, vector<4x256xf32> -> vector<36x256xf32>
    %c0_22 = arith.constant 0 : index
    %c0_23 = arith.constant 0 : index
    %47 = vector.load %arg10[%c0_22, %c0_23] : memref<4x36xf32, #tpu.memory_space<vmem>>, vector<4x36xf32>
    %cst_24 = arith.constant dense<0.000000e+00> : vector<4x256xf32>
    %48 = tpu.matmul %47, %46, %cst_24 {dimension_numbers = #tpu.dot_dimension_numbers<[1], [0], [0], [1], [0, 0, 1, 1], [], []>} : vector<4x36xf32>, vector<36x256xf32>, vector<4x256xf32> -> vector<4x256xf32>
    %c0_25 = arith.constant 0 : index
    %c0_26 = arith.constant 0 : index
    %49 = vector.load %arg11[%c0_25, %c0_26] : memref<4x1xf32, #tpu.memory_space<vmem>>, vector<4x1xf32>
    %50 = vector.broadcast %49 : vector<4x1xf32> to vector<4x256xf32>
    %51 = arith.addf %48, %50 : vector<4x256xf32>
    %c0_27 = arith.constant 0 : index
    %52 = memref.load %arg1[%c0_27] : memref<1xf32, #tpu.memory_space<smem>>
    %53 = vector.broadcast %52 : f32 to vector<4x256xf32>
    %54 = arith.mulf %53, %15 : vector<4x256xf32>
    %55 = arith.addf %51, %54 : vector<4x256xf32>
    %c0_28 = arith.constant 0 : index
    %c0_29 = arith.constant 0 : index
    %c0_30 = arith.constant 0 : index
    %56 = vector.load %arg12[%c0_28, %c0_29, %c0_30] : memref<1x4x256xf32, #tpu.memory_space<vmem>>, vector<1x4x256xf32>
    %57 = vector.shape_cast %56 : vector<1x4x256xf32> to vector<4x256xf32>
    %58 = vector.shape_cast %55 : vector<4x256xf32> to vector<1x4x256xf32>
    tpu.vector_store %arg12[%c0_28, %c0_29, %c0_30], %58 {strides = array<i32>} : memref<1x4x256xf32, #tpu.memory_space<vmem>>, vector<1x4x256xf32>,
    return
  }
  func.func @transform_0(%arg0: i32) -> i32 {
    %c0_i32 = arith.constant 0 : i32
    %c0_i32_0 = arith.constant 0 : i32
    return %c0_i32 : i32
  }
  func.func @transform_1(%arg0: i32) -> (i32, i32) {
    %c0_i32 = arith.constant 0 : i32
    %c0_i32_0 = arith.constant 0 : i32
    %c0_i32_1 = arith.constant 0 : i32
    return %c0_i32, %c0_i32_0 : i32, i32
  }
  func.func @transform_2(%arg0: i32) -> (i32, i32, i32) {
    %c0_i32 = arith.constant 0 : i32
    %c0_i32_0 = arith.constant 0 : i32
    %c0_i32_1 = arith.constant 0 : i32
    return %arg0, %c0_i32, %c0_i32_0 : i32, i32, i32
  }
  func.func @transform_3(%arg0: i32) -> (i32, i32, i32) {
    %c0_i32 = arith.constant 0 : i32
    %c0_i32_0 = arith.constant 0 : i32
    %c0_i32_1 = arith.constant 0 : i32
    return %arg0, %c0_i32, %c0_i32_0 : i32, i32, i32
  }
  func.func @transform_4(%arg0: i32) -> (i32, i32) {
    %c0_i32 = arith.constant 0 : i32
    %c0_i32_0 = arith.constant 0 : i32
    %c0_i32_1 = arith.constant 0 : i32
    return %c0_i32, %c0_i32_0 : i32, i32
  }
  func.func @transform_5(%arg0: i32) -> (i32, i32) {
    %c0_i32 = arith.constant 0 : i32
    %c0_i32_0 = arith.constant 0 : i32
    %c0_i32_1 = arith.constant 0 : i32
    return %c0_i32, %c0_i32_0 : i32, i32
  }
  func.func @transform_6(%arg0: i32) -> (i32, i32) {
    %c0_i32 = arith.constant 0 : i32
    %c0_i32_0 = arith.constant 0 : i32
    %c0_i32_1 = arith.constant 0 : i32
    return %c0_i32, %c0_i32_0 : i32, i32
  }
  func.func @transform_7(%arg0: i32) -> (i32, i32) {
    %c0_i32 = arith.constant 0 : i32
    %c0_i32_0 = arith.constant 0 : i32
    %c0_i32_1 = arith.constant 0 : i32
    return %c0_i32, %c0_i32_0 : i32, i32
  }
  func.func @transform_8(%arg0: i32) -> (i32, i32) {
    %c0_i32 = arith.constant 0 : i32
    %c0_i32_0 = arith.constant 0 : i32
    %c0_i32_1 = arith.constant 0 : i32
    return %c0_i32, %c0_i32_0 : i32, i32
  }
  func.func @transform_9(%arg0: i32) -> (i32, i32) {
    %c0_i32 = arith.constant 0 : i32
    %c0_i32_0 = arith.constant 0 : i32
    %c0_i32_1 = arith.constant 0 : i32
    return %c0_i32, %c0_i32_0 : i32, i32
  }
  func.func @transform_10(%arg0: i32) -> (i32, i32) {
    %c0_i32 = arith.constant 0 : i32
    %c0_i32_0 = arith.constant 0 : i32
    %c0_i32_1 = arith.constant 0 : i32
    return %c0_i32, %c0_i32_0 : i32, i32
  }
  func.func @transform_11(%arg0: i32) -> (i32, i32, i32) {
    %c0_i32 = arith.constant 0 : i32
    %c0_i32_0 = arith.constant 0 : i32
    %c0_i32_1 = arith.constant 0 : i32
    return %arg0, %c0_i32, %c0_i32_0 : i32, i32, i32
  }
}

</mosaic_0001>

<llo_original>
// kernel: tpu_custom_call.1
$region0: #{tpu_custom_call.1}
  #allocation0 [shape = 'u32[]', space=smem, size = 0x4, offset = 0x4, fixed_abs, tag = 'smem constant byte address 0x4 - core index']
  #allocation1 [shape = 'u32[144,128]{1,0:T(1,128)}', space=vmem, size = 0x12000, scoped, tag = 'internal scratch']
  #allocation2 [shape = 'f32[1]{0:T(128)S(6)}', space=smem, size = 0x200, scoped, tag = 'scoped memory for tpu_custom_call.1']
  %s0 = inlined_call_operand.<no memory space> [shape: f32[1], index: 0, kind: input, shape index: {}]
  %s1 = inlined_call_operand.vmem [shape: f32[2,256], index: 1, kind: input, shape index: {}]
  %s2 = inlined_call_operand.vmem [shape: f32[2,4,256], index: 2, kind: input, shape index: {}]
  %s3 = inlined_call_operand.vmem [shape: f32[2,4,256], index: 3, kind: input, shape index: {}]
  %s4 = inlined_call_operand.vmem [shape: f32[52,4], index: 4, kind: input, shape index: {}]
  %s5 = inlined_call_operand.vmem [shape: f32[52,4], index: 5, kind: input, shape index: {}]
  %s6 = inlined_call_operand.vmem [shape: f32[52,1], index: 6, kind: input, shape index: {}]
  %s7 = inlined_call_operand.vmem [shape: f32[4,48], index: 7, kind: input, shape index: {}]
  %s8 = inlined_call_operand.vmem [shape: f32[4,1], index: 8, kind: input, shape index: {}]
  %s9 = inlined_call_operand.vmem [shape: f32[4,36], index: 9, kind: input, shape index: {}]
  %s10 = inlined_call_operand.vmem [shape: f32[4,1], index: 10, kind: input, shape index: {}]
  %s11 = inlined_call_operand.hbm [shape: f32[2,4,256], index: 11, kind: output, shape index: {}]
  %s12 = sld [smem:[#allocation0]]
  $region77: #{tpu_custom_call.1} parent=0
    _
  %s14 = ssub.s32 1, %s12
  %s15 = scalar_select 0, %s14, %s12
  %16 = sst [smem:[#allocation2]] %s0
  $region1: #{tpu_custom_call.1} parent=0
    #allocation3 [shape = 'u8[8192]{0}', space=vmem, size = 0x2000, scoped, tag = 'output window, operand 0']
    #allocation4 [shape = 's32[2]{0}', space=sflag, size = 0x8, scoped, tag = 'scoped memory for tpu_custom_call.1']
    %17 = vsyncpa [#allocation4], 0
    %s18 = scalar_lea.sflag [#allocation4], 1
    %19 = vsyncpa %s18, 0
    loop: start=0, step=1, limit=4
    $region2: #{tpu_custom_call.1} parent=1 // loop_pre_header
      _
    $region3: #{tpu_custom_call.1} parent=1 // loop_header
      %s21 = sphi 0, %s25
      %p22 = scmp.ge.s32.totalorder %s21, 4
      %s29 = sphi 0, %s29
      %s31 = sphi 0, %s29
      %s32 = sphi 0, %s31
      %s46 = sphi 0, %s32
      %s50 = sphi 0, %s50
      %s52 = sphi 0, %s50
      %s53 = sphi 0, %s52
      %s67 = sphi 0, %s53
      %s73 = sphi 0, %s75
      %s76 = sphi 0, %s73
      %s77 = sphi 0, %s76
      %s93 = sphi 0, %s77
      %s99 = sphi 0, %s101
      %s102 = sphi 0, %s99
      %s103 = sphi 0, %s102
      %s119 = sphi 0, %s103
      %s123 = sphi 0, %s123
      %s125 = sphi 0, %s123
      %s126 = sphi 0, %s125
      %s140 = sphi 0, %s126
      %s144 = sphi 0, %s144
      %s146 = sphi 0, %s144
      %s147 = sphi 0, %s146
      %s161 = sphi 0, %s147
      %s165 = sphi 0, %s165
      %s167 = sphi 0, %s165
      %s168 = sphi 0, %s167
      %s182 = sphi 0, %s168
      %s186 = sphi 0, %s186
      %s188 = sphi 0, %s186
      %s189 = sphi 0, %s188
      %s203 = sphi 0, %s189
      %s207 = sphi 0, %s207
      %s209 = sphi 0, %s207
      %s210 = sphi 0, %s209
      %s224 = sphi 0, %s210
      %s228 = sphi 0, %s228
      %s230 = sphi 0, %s228
      %s231 = sphi 0, %s230
      %s245 = sphi 0, %s231
      %s249 = sphi 0, %s249
      %s251 = sphi 0, %s249
      %s252 = sphi 0, %s251
      %s266 = sphi 0, %s252
      %s272 = sphi 0, %s274
      %s275 = sphi 0, %s272
      %s276 = sphi 0, %s275
      %s292 = sphi 0, %s276
    $region4: #{tpu_custom_call.1} parent=1 // loop_header_branch
      %24 = sbr.rel (%p22) target = $region8
    $region5: #{tpu_custom_call.1} parent=1 // loop_body
      %s26 = ssub.s32 %s21, 1
      %s27 = ssub.s32 %s21, 2
      %s28 = sadd.s32 %s21, 1
      %s30 = sadd.s32 %s29, 1
      %p33 = scmp.eq.s32.totalorder %s21, 1
      %p34 = scmp.ne.s32.totalorder %s29, %s31
      %p35 = scmp.eq.s32.totalorder %s21, 0
      %p36 = por %p34, %p35
      %p37 = scmp.ne.s32.totalorder %s29, %s31
      %p38 = scmp.eq.s32.totalorder %s26, 1
      %p39 = por %p37, %p38
      %p40 = scmp.ne.s32.totalorder %s31, %s32
      %p41 = scmp.eq.s32.totalorder %s26, 0
      %p42 = por %p40, %p41
      %p43 = scmp.ne.s32.totalorder %s31, %s32
      %p44 = scmp.eq.s32.totalorder %s27, 1
      %p45 = por %p43, %p44
      %p47 = scmp.ne.s32.totalorder %s32, %s46
      %p48 = scmp.eq.s32.totalorder %s27, 0
      %p49 = por %p47, %p48
      %s51 = sadd.s32 %s50, 1
      %p54 = scmp.eq.s32.totalorder %s21, 1
      %p55 = scmp.ne.s32.totalorder %s50, %s52
      %p56 = scmp.eq.s32.totalorder %s21, 0
      %p57 = por %p55, %p56
      %p58 = scmp.ne.s32.totalorder %s50, %s52
      %p59 = scmp.eq.s32.totalorder %s26, 1
      %p60 = por %p58, %p59
      %p61 = scmp.ne.s32.totalorder %s52, %s53
      %p62 = scmp.eq.s32.totalorder %s26, 0
      %p63 = por %p61, %p62
      %p64 = scmp.ne.s32.totalorder %s52, %s53
      %p65 = scmp.eq.s32.totalorder %s27, 1
      %p66 = por %p64, %p65
      %p68 = scmp.ne.s32.totalorder %s53, %s67
      %p69 = scmp.eq.s32.totalorder %s27, 0
      %p70 = por %p68, %p69
      %s71 = ssub.s32 %s21, %s28
      %p72 = scmp.eq.s32.totalorder %s71, 0
      %s74 = sadd.s32 %s73, 1
      %s75 = scalar_select %p72, %s73, %s74
      %p78 = pneg %p72
      %p79 = scmp.eq.s32.totalorder %s21, 1
      %p80 = por %p78, %p79
      %p81 = scmp.ne.s32.totalorder %s73, %s76
      %p82 = scmp.eq.s32.totalorder %s21, 0
      %p83 = por %p81, %p82
      %p84 = scmp.ne.s32.totalorder %s73, %s76
      %p85 = scmp.eq.s32.totalorder %s26, 1
      %p86 = por %p84, %p85
      %p87 = scmp.ne.s32.totalorder %s76, %s77
      %p88 = scmp.eq.s32.totalorder %s26, 0
      %p89 = por %p87, %p88
      %p90 = scmp.ne.s32.totalorder %s76, %s77
      %p91 = scmp.eq.s32.totalorder %s27, 1
      %p92 = por %p90, %p91
      %p94 = scmp.ne.s32.totalorder %s77, %s93
      %p95 = scmp.eq.s32.totalorder %s27, 0
      %p96 = por %p94, %p95
      %s97 = ssub.s32 %s21, %s28
      %p98 = scmp.eq.s32.totalorder %s97, 0
      %s100 = sadd.s32 %s99, 1
      %s101 = scalar_select %p98, %s99, %s100
      %p104 = pneg %p98
      %p105 = scmp.eq.s32.totalorder %s21, 1
      %p106 = por %p104, %p105
      %p107 = scmp.ne.s32.totalorder %s99, %s102
      %p108 = scmp.eq.s32.totalorder %s21, 0
      %p109 = por %p107, %p108
      %p110 = scmp.ne.s32.totalorder %s99, %s102
      %p111 = scmp.eq.s32.totalorder %s26, 1
      %p112 = por %p110, %p111
      %p113 = scmp.ne.s32.totalorder %s102, %s103
      %p114 = scmp.eq.s32.totalorder %s26, 0
      %p115 = por %p113, %p114
      %p116 = scmp.ne.s32.totalorder %s102, %s103
      %p117 = scmp.eq.s32.totalorder %s27, 1
      %p118 = por %p116, %p117
      %p120 = scmp.ne.s32.totalorder %s103, %s119
      %p121 = scmp.eq.s32.totalorder %s27, 0
      %p122 = por %p120, %p121
      %s124 = sadd.s32 %s123, 1
      %p127 = scmp.eq.s32.totalorder %s21, 1
      %p128 = scmp.ne.s32.totalorder %s123, %s125
      %p129 = scmp.eq.s32.totalorder %s21, 0
      %p130 = por %p128, %p129
      %p131 = scmp.ne.s32.totalorder %s123, %s125
      %p132 = scmp.eq.s32.totalorder %s26, 1
      %p133 = por %p131, %p132
      %p134 = scmp.ne.s32.totalorder %s125, %s126
      %p135 = scmp.eq.s32.totalorder %s26, 0
      %p136 = por %p134, %p135
      %p137 = scmp.ne.s32.totalorder %s125, %s126
      %p138 = scmp.eq.s32.totalorder %s27, 1
      %p139 = por %p137, %p138
      %p141 = scmp.ne.s32.totalorder %s126, %s140
      %p142 = scmp.eq.s32.totalorder %s27, 0
      %p143 = por %p141, %p142
      %s145 = sadd.s32 %s144, 1
      %p148 = scmp.eq.s32.totalorder %s21, 1
      %p149 = scmp.ne.s32.totalorder %s144, %s146
      %p150 = scmp.eq.s32.totalorder %s21, 0
      %p151 = por %p149, %p150
      %p152 = scmp.ne.s32.totalorder %s144, %s146
      %p153 = scmp.eq.s32.totalorder %s26, 1
      %p154 = por %p152, %p153
      %p155 = scmp.ne.s32.totalorder %s146, %s147
      %p156 = scmp.eq.s32.totalorder %s26, 0
      %p157 = por %p155, %p156
      %p158 = scmp.ne.s32.totalorder %s146, %s147
      %p159 = scmp.eq.s32.totalorder %s27, 1
      %p160 = por %p158, %p159
      %p162 = scmp.ne.s32.totalorder %s147, %s161
      %p163 = scmp.eq.s32.totalorder %s27, 0
      %p164 = por %p162, %p163
      %s166 = sadd.s32 %s165, 1
      %p169 = scmp.eq.s32.totalorder %s21, 1
      %p170 = scmp.ne.s32.totalorder %s165, %s167
      %p171 = scmp.eq.s32.totalorder %s21, 0
      %p172 = por %p170, %p171
      %p173 = scmp.ne.s32.totalorder %s165, %s167
      %p174 = scmp.eq.s32.totalorder %s26, 1
      %p175 = por %p173, %p174
      %p176 = scmp.ne.s32.totalorder %s167, %s168
      %p177 = scmp.eq.s32.totalorder %s26, 0
      %p178 = por %p176, %p177
      %p179 = scmp.ne.s32.totalorder %s167, %s168
      %p180 = scmp.eq.s32.totalorder %s27, 1
      %p181 = por %p179, %p180
      %p183 = scmp.ne.s32.totalorder %s168, %s182
      %p184 = scmp.eq.s32.totalorder %s27, 0
      %p185 = por %p183, %p184
      %s187 = sadd.s32 %s186, 1
      %p190 = scmp.eq.s32.totalorder %s21, 1
      %p191 = scmp.ne.s32.totalorder %s186, %s188
      %p192 = scmp.eq.s32.totalorder %s21, 0
      %p193 = por %p191, %p192
      %p194 = scmp.ne.s32.totalorder %s186, %s188
      %p195 = scmp.eq.s32.totalorder %s26, 1
      %p196 = por %p194, %p195
      %p197 = scmp.ne.s32.totalorder %s188, %s189
      %p198 = scmp.eq.s32.totalorder %s26, 0
      %p199 = por %p197, %p198
      %p200 = scmp.ne.s32.totalorder %s188, %s189
      %p201 = scmp.eq.s32.totalorder %s27, 1
      %p202 = por %p200, %p201
      %p204 = scmp.ne.s32.totalorder %s189, %s203
      %p205 = scmp.eq.s32.totalorder %s27, 0
      %p206 = por %p204, %p205
      %s208 = sadd.s32 %s207, 1
      %p211 = scmp.eq.s32.totalorder %s21, 1
      %p212 = scmp.ne.s32.totalorder %s207, %s209
      %p213 = scmp.eq.s32.totalorder %s21, 0
      %p214 = por %p212, %p213
      %p215 = scmp.ne.s32.totalorder %s207, %s209
      %p216 = scmp.eq.s32.totalorder %s26, 1
      %p217 = por %p215, %p216
      %p218 = scmp.ne.s32.totalorder %s209, %s210
      %p219 = scmp.eq.s32.totalorder %s26, 0
      %p220 = por %p218, %p219
      %p221 = scmp.ne.s32.totalorder %s209, %s210
      %p222 = scmp.eq.s32.totalorder %s27, 1
      %p223 = por %p221, %p222
      %p225 = scmp.ne.s32.totalorder %s210, %s224
      %p226 = scmp.eq.s32.totalorder %s27, 0
      %p227 = por %p225, %p226
      %s229 = sadd.s32 %s228, 1
      %p232 = scmp.eq.s32.totalorder %s21, 1
      %p233 = scmp.ne.s32.totalorder %s228, %s230
      %p234 = scmp.eq.s32.totalorder %s21, 0
      %p235 = por %p233, %p234
      %p236 = scmp.ne.s32.totalorder %s228, %s230
      %p237 = scmp.eq.s32.totalorder %s26, 1
      %p238 = por %p236, %p237
      %p239 = scmp.ne.s32.totalorder %s230, %s231
      %p240 = scmp.eq.s32.totalorder %s26, 0
      %p241 = por %p239, %p240
      %p242 = scmp.ne.s32.totalorder %s230, %s231
      %p243 = scmp.eq.s32.totalorder %s27, 1
      %p244 = por %p242, %p243
      %p246 = scmp.ne.s32.totalorder %s231, %s245
      %p247 = scmp.eq.s32.totalorder %s27, 0
      %p248 = por %p246, %p247
      %s250 = sadd.s32 %s249, 1
      %p253 = scmp.eq.s32.totalorder %s21, 1
      %p254 = scmp.ne.s32.totalorder %s249, %s251
      %p255 = scmp.eq.s32.totalorder %s21, 0
      %p256 = por %p254, %p255
      %p257 = scmp.ne.s32.totalorder %s249, %s251
      %p258 = scmp.eq.s32.totalorder %s26, 1
      %p259 = por %p257, %p258
      %p260 = scmp.ne.s32.totalorder %s251, %s252
      %p261 = scmp.eq.s32.totalorder %s26, 0
      %p262 = por %p260, %p261
      %p263 = scmp.ne.s32.totalorder %s251, %s252
      %p264 = scmp.eq.s32.totalorder %s27, 1
      %p265 = por %p263, %p264
      %p267 = scmp.ne.s32.totalorder %s252, %s266
      %p268 = scmp.eq.s32.totalorder %s27, 0
      %p269 = por %p267, %p268
      %s270 = ssub.s32 %s21, %s28
      %p271 = scmp.eq.s32.totalorder %s270, 0
      %s273 = sadd.s32 %s272, 1
      %s274 = scalar_select %p271, %s272, %s273
      %p277 = pneg %p271
      %p278 = scmp.eq.s32.totalorder %s21, 1
      %p279 = por %p277, %p278
      %p280 = scmp.ne.s32.totalorder %s272, %s275
      %p281 = scmp.eq.s32.totalorder %s21, 0
      %p282 = por %p280, %p281
      %p283 = scmp.ne.s32.totalorder %s272, %s275
      %p284 = scmp.eq.s32.totalorder %s26, 1
      %p285 = por %p283, %p284
      %p286 = scmp.ne.s32.totalorder %s275, %s276
      %p287 = scmp.eq.s32.totalorder %s26, 0
      %p288 = por %p286, %p287
      %p289 = scmp.ne.s32.totalorder %s275, %s276
      %p290 = scmp.eq.s32.totalorder %s27, 1
      %p291 = por %p289, %p290
      %p293 = scmp.ne.s32.totalorder %s276, %s292
      %p294 = scmp.eq.s32.totalorder %s27, 0
      %p295 = por %p293, %p294
      %p296 = scmp.le.s32.totalorder 1, %s21
      %p297 = scmp.lt.s32.totalorder %s21, 3
      %p298 = pnand %p296, %p297
      %p299 = pneg %p298
      // Predicated region
      $region9: #{tpu_custom_call.1} parent=5 // pred_check
        _
      $region10: #{tpu_custom_call.1} parent=5 // pred_check_branch
        %301 = sbr.rel (%p298) target = $region12
      $region11: #{tpu_custom_call.1} parent=5 // pred_region
        %s302 = ssub.s32 %s21, 1
        // Predicated region
        $region13: #{tpu_custom_call.1} parent=11 // pred_check
          %p303 = pneg %p42
        $region14: #{tpu_custom_call.1} parent=11 // pred_check_branch
          %305 = sbr.rel (%p303) target = $region16
        $region15: #{tpu_custom_call.1} parent=11 // pred_region
          _
        $region16: #{tpu_custom_call.1} parent=11 // pred_fallthru
          _
        // Predicated region
        $region17: #{tpu_custom_call.1} parent=11 // pred_check
          %p306 = pneg %p63
        $region18: #{tpu_custom_call.1} parent=11 // pred_check_branch
          %308 = sbr.rel (%p306) target = $region20
        $region19: #{tpu_custom_call.1} parent=11 // pred_region
          _
        $region20: #{tpu_custom_call.1} parent=11 // pred_fallthru
          _
        // Predicated region
        $region21: #{tpu_custom_call.1} parent=11 // pred_check
          %p309 = pneg %p136
        $region22: #{tpu_custom_call.1} parent=11 // pred_check_branch
          %311 = sbr.rel (%p309) target = $region24
        $region23: #{tpu_custom_call.1} parent=11 // pred_region
          _
        $region24: #{tpu_custom_call.1} parent=11 // pred_fallthru
          _
        // Predicated region
        $region25: #{tpu_custom_call.1} parent=11 // pred_check
          %p312 = pneg %p157
        $region26: #{tpu_custom_call.1} parent=11 // pred_check_branch
          %314 = sbr.rel (%p312) target = $region28
        $region27: #{tpu_custom_call.1} parent=11 // pred_region
          _
        $region28: #{tpu_custom_call.1} parent=11 // pred_fallthru
          _
        // Predicated region
        $region29: #{tpu_custom_call.1} parent=11 // pred_check
          %p315 = pneg %p178
        $region30: #{tpu_custom_call.1} parent=11 // pred_check_branch
          %317 = sbr.rel (%p315) target = $region32
        $region31: #{tpu_custom_call.1} parent=11 // pred_region
          _
        $region32: #{tpu_custom_call.1} parent=11 // pred_fallthru
          _
        // Predicated region
        $region33: #{tpu_custom_call.1} parent=11 // pred_check
          %p318 = pneg %p199
        $region34: #{tpu_custom_call.1} parent=11 // pred_check_branch
          %320 = sbr.rel (%p318) target = $region36
        $region35: #{tpu_custom_call.1} parent=11 // pred_region
          _
        $region36: #{tpu_custom_call.1} parent=11 // pred_fallthru
          _
        // Predicated region
        $region37: #{tpu_custom_call.1} parent=11 // pred_check
          %p321 = pneg %p220
        $region38: #{tpu_custom_call.1} parent=11 // pred_check_branch
          %323 = sbr.rel (%p321) target = $region40
        $region39: #{tpu_custom_call.1} parent=11 // pred_region
          _
        $region40: #{tpu_custom_call.1} parent=11 // pred_fallthru
          _
        // Predicated region
        $region41: #{tpu_custom_call.1} parent=11 // pred_check
          %p324 = pneg %p241
        $region42: #{tpu_custom_call.1} parent=11 // pred_check_branch
          %326 = sbr.rel (%p324) target = $region44
        $region43: #{tpu_custom_call.1} parent=11 // pred_region
          _
        $region44: #{tpu_custom_call.1} parent=11 // pred_fallthru
          _
        // Predicated region
        $region45: #{tpu_custom_call.1} parent=11 // pred_check
          %p327 = pneg %p262
        $region46: #{tpu_custom_call.1} parent=11 // pred_check_branch
          %329 = sbr.rel (%p327) target = $region48
        $region47: #{tpu_custom_call.1} parent=11 // pred_region
          _
        $region48: #{tpu_custom_call.1} parent=11 // pred_fallthru
          _
      $region12: #{tpu_custom_call.1} parent=5 // pred_fallthru
        _
      %p330 = scmp.lt.s32.totalorder %s21, 2
      // Predicated region
      $region49: #{tpu_custom_call.1} parent=5 // pred_check
        %p331 = pneg %p330
      $region50: #{tpu_custom_call.1} parent=5 // pred_check_branch
        %333 = sbr.rel (%p331) target = $region52
      $region51: #{tpu_custom_call.1} parent=5 // pred_region
        // Predicated region
        $region53: #{tpu_custom_call.1} parent=51 // pred_check
          %p334 = pneg %p83
        $region54: #{tpu_custom_call.1} parent=51 // pred_check_branch
          %336 = sbr.rel (%p334) target = $region56
        $region55: #{tpu_custom_call.1} parent=51 // pred_region
          %p337 = scmp.lt.s32.totalorder %s21, 1
          %s338 = scalar_select %p337, %s21, 1
          %s339 = smul.addr %s338, 2
          %s340 = smul.addr %s339, 4
          %s341 = scalar_lea.vmem %s2, %s340
        $region56: #{tpu_custom_call.1} parent=51 // pred_fallthru
          _
        // Predicated region
        $region57: #{tpu_custom_call.1} parent=51 // pred_check
          %p342 = pneg %p109
        $region58: #{tpu_custom_call.1} parent=51 // pred_check_branch
          %344 = sbr.rel (%p342) target = $region60
        $region59: #{tpu_custom_call.1} parent=51 // pred_region
          %p345 = scmp.lt.s32.totalorder %s21, 1
          %s346 = scalar_select %p345, %s21, 1
          %s347 = smul.addr %s346, 2
          %s348 = smul.addr %s347, 4
          %s349 = scalar_lea.vmem %s3, %s348
        $region60: #{tpu_custom_call.1} parent=51 // pred_fallthru
          _
      $region52: #{tpu_custom_call.1} parent=5 // pred_fallthru
        _
      %p350 = scmp.le.s32.totalorder 1, %s21
      %p351 = scmp.lt.s32.totalorder %s21, 3
      %p352 = pnand %p350, %p351
      %p353 = pneg %p352
      // Predicated region
      $region61: #{tpu_custom_call.1} parent=5 // pred_check
        _
      $region62: #{tpu_custom_call.1} parent=5 // pred_check_branch
        %355 = sbr.rel (%p352) target = $region64
      $region63: #{tpu_custom_call.1} parent=5 // pred_region
        %s356 = ssub.s32 %s21, 1
        %p357 = pneg %p42
        %p358 = pneg %p39
        %p359 = pneg %p63
        %p360 = pneg %p60
        %p361 = scmp.lt.s32.totalorder %s26, 1
        %s362 = scalar_select %p361, %s26, 1
        %s363 = smul.addr %s362, 2
        %s364 = smul.addr %s363, 4
        %s365 = scalar_lea.vmem %s2, %s364
        %p366 = pneg %p89
        %p367 = pneg %p86
        %p368 = scmp.lt.s32.totalorder %s26, 1
        %s369 = scalar_select %p368, %s26, 1
        %s370 = smul.addr %s369, 2
        %s371 = smul.addr %s370, 4
        %s372 = scalar_lea.vmem %s3, %s371
        %p373 = pneg %p115
        %p374 = pneg %p112
        %p375 = pneg %p136
        %p376 = pneg %p133
        %p377 = pneg %p157
        %p378 = pneg %p154
        %p379 = pneg %p178
        %p380 = pneg %p175
        %p381 = pneg %p199
        %p382 = pneg %p196
        %p383 = pneg %p220
        %p384 = pneg %p217
        %p385 = pneg %p241
        %p386 = pneg %p238
        %p387 = pneg %p262
        %p388 = pneg %p259
        %p389 = pneg %p288
        %p390 = pneg %p285
        %s391 = sand.u32 %s275, 1
        %s392 = scalar_lea.sflag [#allocation4], %s391
        %s393 = sand.u32 %s275, 1
        %s394 = smul.addr %s393, 8
        %s395 = scalar_lea.vmem [#allocation3], %s394
        %p396 = scmp.lt.s32.totalorder %s26, 1
        %s397 = scalar_select %p396, %s26, 1
        %s398 = smul.addr %s397, 2
        %s399 = smul.addr %s398, 4
        %s400 = scalar_lea.vmem %s2, %s399
        %p401 = scmp.lt.s32.totalorder %s26, 1
        %s402 = scalar_select %p401, %s26, 1
        %s403 = smul.addr %s402, 2
        %s404 = smul.addr %s403, 4
        %s405 = scalar_lea.vmem %s3, %s404
        %v406 = vld [vmem:[%s400] sm:$0xff]
        %v407 = vld [vmem:[%s405] sm:$0xff]
        %v408 = vld [vmem:[%s4] sm:$0xff]
        %v409 = vld [vmem:[%s4 + $0x8] sm:$0xff]
        %v410 = vld [vmem:[%s4 + $0x10] sm:$0xff]
        %v411 = vld [vmem:[%s4 + $0x18] sm:$0xff]
        %v412 = vld [vmem:[%s4 + $0x20] sm:$0xff]
        %v413 = vld [vmem:[%s4 + $0x28] sm:$0xff]
        %v414 = vld [vmem:[%s4 + $0x30] sm:$0xf]
        %v415 = vld [vmem:[%s5] sm:$0xff]
        %v416 = vld [vmem:[%s5 + $0x8] sm:$0xff]
        %v417 = vld [vmem:[%s5 + $0x10] sm:$0xff]
        %v418 = vld [vmem:[%s5 + $0x18] sm:$0xff]
        %v419 = vld [vmem:[%s5 + $0x20] sm:$0xff]
        %v420 = vld [vmem:[%s5 + $0x28] sm:$0xff]
        %v421 = vld [vmem:[%s5 + $0x30] sm:$0xf]
        %v423 = vcombine.high %v407, %v407
        %vm424 = vcmask 31744
        %v426 = vsel %vm424, %v415, 0
        %v429 = vsel %vm424, %v416, 0
        %v432 = vsel %vm424, %v417, 0
        %v435 = vsel %vm424, %v418, 0
        %v438 = vsel %vm424, %v419, 0
        %v441 = vsel %vm424, %v420, 0
        %v444 = vsel %vm424, %v421, 0
        %vm446 = vcmask 1043456
        %v447 = vsel %vm446, %v407, 0
        %v449 = vsel %vm446, %v423, 0
        %451 = vmatprep.subr.mxu0 %v449
        %452 = vmatpush1.msra.mxu0 %v447
        %453 = vmatprep.subr.mxu0 0.0
        %454 = vmatpush1.msra.mxu0 0.0
        %455 = vmatprep.subr.mxu0 0.0
        %456 = vmatpush1.msra.mxu0 0.0
        %457 = vmatprep.subr.mxu0 0.0
        %458 = vmatpush1.msra.mxu0 0.0
        %459 = vmatprep.subr.mxu0 0.0
        %460 = vmatpush1.msra.mxu0 0.0
        %461 = vmatprep.subr.mxu0 0.0
        %462 = vmatpush1.msra.mxu0 0.0
        %463 = vmatprep.subr.mxu0 0.0
        %464 = vmatpush1.msra.mxu0 0.0
        %465 = vmatprep.subr.mxu0 0.0
        %466 = vmatpush1.msra.mxu0 0.0
        %467 = vmatprep.subr.mxu0 0.0
        %468 = vmatpush1.msra.mxu0 0.0
        %469 = vmatprep.subr.mxu0 0.0
        %470 = vmatpush1.msra.mxu0 0.0
        %471 = vmatprep.subr.mxu0 0.0
        %472 = vmatpush1.msra.mxu0 0.0
        %473 = vmatprep.subr.mxu0 0.0
        %474 = vmatpush1.msra.mxu0 0.0
        %475 = vmatprep.subr.mxu0 0.0
        %476 = vmatpush1.msra.mxu0 0.0
        %477 = vmatprep.subr.mxu0 0.0
        %478 = vmatpush1.msra.mxu0 0.0
        %479 = vmatprep.subr.mxu0 0.0
        %480 = vmatpush1.msra.mxu0 0.0
        %481 = vmatprep.subr.mxu0 0.0
        %482 = vmatpush1.msra.mxu0 0.0
        %483 = vmatprep.subr.mxu0 0.0
        %484 = vmatpush1.msra.mxu0 0.0
        %485 = vmatprep.subr.mxu0 0.0
        %486 = vmatpush1.msra.mxu0 0.0
        %487 = vmatprep.subr.mxu0 0.0
        %488 = vmatpush1.msra.mxu0 0.0
        %489 = vmatprep.subr.mxu0 0.0
        %490 = vmatpush1.msra.mxu0 0.0
        %491 = vmatprep.subr.mxu0 0.0
        %492 = vmatpush1.msra.mxu0 0.0
        %493 = vmatprep.subr.mxu0 0.0
        %494 = vmatpush1.msra.mxu0 0.0
        %495 = vmatprep.subr.mxu0 0.0
        %496 = vmatpush1.msra.mxu0 0.0
        %497 = vmatprep.subr.mxu0 0.0
        %498 = vmatpush1.msra.mxu0 0.0
        %499 = vmatprep.subr.mxu0 0.0
        %500 = vmatpush1.msra.mxu0 0.0
        %501 = vmatprep.subr.mxu0 0.0
        %502 = vmatpush1.msra.mxu0 0.0
        %503 = vmatprep.subr.mxu0 0.0
        %504 = vmatpush1.msra.mxu0 0.0
        %505 = vmatprep.subr.mxu0 0.0
        %506 = vmatpush1.msra.mxu0 0.0
        %507 = vmatprep.subr.mxu0 0.0
        %508 = vmatpush1.msra.mxu0 0.0
        %509 = vmatprep.subr.mxu0 0.0
        %510 = vmatpush1.msra.mxu0 0.0
        %511 = vmatprep.subr.mxu0 0.0
        %512 = vmatpush1.msra.mxu0 0.0
        %513 = vmatprep.subr.mxu0 0.0
        %514 = vmatpush1.msra.mxu0 0.0
        %515 = vmatprep.mubr.f32.mxu0 0.0
        %516 = vmatmul.mubr.f32.gmra.mrb[0].mxu0 %v426
        %v517 = vpop.f32.mrb[0].mxu0
        %v518 = vadd.f32 0.0, %v517
        %v519 = vpop.f32.mrb[0].mxu0
        %v520 = vadd.f32 0.0, %v519
        %521 = vmatprep.mubr.f32.mxu0 0.0
        %522 = vmatmul.mubr.f32.gmra.mrb[0].mxu0 %v429
        %v523 = vpop.f32.mrb[0].mxu0
        %v524 = vadd.f32 0.0, %v523
        %v525 = vpop.f32.mrb[0].mxu0
        %v526 = vadd.f32 0.0, %v525
        %527 = vmatprep.mubr.f32.mxu0 0.0
        %528 = vmatmul.mubr.f32.gmra.mrb[0].mxu0 %v432
        %v529 = vpop.f32.mrb[0].mxu0
        %v530 = vadd.f32 0.0, %v529
        %v531 = vpop.f32.mrb[0].mxu0
        %v532 = vadd.f32 0.0, %v531
        %533 = vmatprep.mubr.f32.mxu0 0.0
        %534 = vmatmul.mubr.f32.gmra.mrb[0].mxu0 %v435
        %v535 = vpop.f32.mrb[0].mxu0
        %v536 = vadd.f32 0.0, %v535
        %v537 = vpop.f32.mrb[0].mxu0
        %v538 = vadd.f32 0.0, %v537
        %539 = vmatprep.mubr.f32.mxu0 0.0
        %540 = vmatmul.mubr.f32.gmra.mrb[0].mxu0 %v438
        %v541 = vpop.f32.mrb[0].mxu0
        %v542 = vadd.f32 0.0, %v541
        %v543 = vpop.f32.mrb[0].mxu0
        %v544 = vadd.f32 0.0, %v543
        %545 = vmatprep.mubr.f32.mxu0 0.0
        %546 = vmatmul.mubr.f32.gmra.mrb[0].mxu0 %v441
        %v547 = vpop.f32.mrb[0].mxu0
        %v548 = vadd.f32 0.0, %v547
        %v549 = vpop.f32.mrb[0].mxu0
        %v550 = vadd.f32 0.0, %v549
        %551 = vmatprep.mubr.f32.mxu0 0.0
        %552 = vmatmul.mubr.f32.gmra.mrb[0].mxu0 %v444
        %v553 = vpop.f32.mrb[0].mxu0
        %v554 = vadd.f32 0.0, %v553
        %v555 = vpop.f32.mrb[0].mxu0
        %v556 = vadd.f32 0.0, %v555
        %557 = vdwg.mxu0
        %v559 = vcombine.high %v406, %v406
        %v561 = vsel %vm424, %v408, 0
        %v564 = vsel %vm424, %v409, 0
        %v567 = vsel %vm424, %v410, 0
        %v570 = vsel %vm424, %v411, 0
        %v573 = vsel %vm424, %v412, 0
        %v576 = vsel %vm424, %v413, 0
        %v579 = vsel %vm424, %v414, 0
        %v581 = vsel %vm446, %v406, 0
        %v583 = vsel %vm446, %v559, 0
        %585 = vmatprep.subr.mxu0 %v583
        %586 = vmatpush1.msra.mxu0 %v581
        %587 = vmatprep.subr.mxu0 0.0
        %588 = vmatpush1.msra.mxu0 0.0
        %589 = vmatprep.subr.mxu0 0.0
        %590 = vmatpush1.msra.mxu0 0.0
        %591 = vmatprep.subr.mxu0 0.0
        %592 = vmatpush1.msra.mxu0 0.0
        %593 = vmatprep.subr.mxu0 0.0
        %594 = vmatpush1.msra.mxu0 0.0
        %595 = vmatprep.subr.mxu0 0.0
        %596 = vmatpush1.msra.mxu0 0.0
        %597 = vmatprep.subr.mxu0 0.0
        %598 = vmatpush1.msra.mxu0 0.0
        %599 = vmatprep.subr.mxu0 0.0
        %600 = vmatpush1.msra.mxu0 0.0
        %601 = vmatprep.subr.mxu0 0.0
        %602 = vmatpush1.msra.mxu0 0.0
        %603 = vmatprep.subr.mxu0 0.0
        %604 = vmatpush1.msra.mxu0 0.0
        %605 = vmatprep.subr.mxu0 0.0
        %606 = vmatpush1.msra.mxu0 0.0
        %607 = vmatprep.subr.mxu0 0.0
        %608 = vmatpush1.msra.mxu0 0.0
        %609 = vmatprep.subr.mxu0 0.0
        %610 = vmatpush1.msra.mxu0 0.0
        %611 = vmatprep.subr.mxu0 0.0
        %612 = vmatpush1.msra.mxu0 0.0
        %613 = vmatprep.subr.mxu0 0.0
        %614 = vmatpush1.msra.mxu0 0.0
        %615 = vmatprep.subr.mxu0 0.0
        %616 = vmatpush1.msra.mxu0 0.0
        %617 = vmatprep.subr.mxu0 0.0
        %618 = vmatpush1.msra.mxu0 0.0
        %619 = vmatprep.subr.mxu0 0.0
        %620 = vmatpush1.msra.mxu0 0.0
        %621 = vmatprep.subr.mxu0 0.0
        %622 = vmatpush1.msra.mxu0 0.0
        %623 = vmatprep.subr.mxu0 0.0
        %624 = vmatpush1.msra.mxu0 0.0
        %625 = vmatprep.subr.mxu0 0.0
        %626 = vmatpush1.msra.mxu0 0.0
        %627 = vmatprep.subr.mxu0 0.0
        %628 = vmatpush1.msra.mxu0 0.0
        %629 = vmatprep.subr.mxu0 0.0
        %630 = vmatpush1.msra.mxu0 0.0
        %631 = vmatprep.subr.mxu0 0.0
        %632 = vmatpush1.msra.mxu0 0.0
        %633 = vmatprep.subr.mxu0 0.0
        %634 = vmatpush1.msra.mxu0 0.0
        %635 = vmatprep.subr.mxu0 0.0
        %636 = vmatpush1.msra.mxu0 0.0
        %637 = vmatprep.subr.mxu0 0.0
        %638 = vmatpush1.msra.mxu0 0.0
        %639 = vmatprep.subr.mxu0 0.0
        %640 = vmatpush1.msra.mxu0 0.0
        %641 = vmatprep.subr.mxu0 0.0
        %642 = vmatpush1.msra.mxu0 0.0
        %643 = vmatprep.subr.mxu0 0.0
        %644 = vmatpush1.msra.mxu0 0.0
        %645 = vmatprep.subr.mxu0 0.0
        %646 = vmatpush1.msra.mxu0 0.0
        %647 = vmatprep.subr.mxu0 0.0
        %648 = vmatpush1.msra.mxu0 0.0
        %649 = vmatprep.mubr.f32.mxu0 0.0
        %650 = vmatmul.mubr.f32.gmra.mrb[0].mxu0 %v561
        %v651 = vpop.f32.mrb[0].mxu0
        %v652 = vadd.f32 %v518, %v651
        %v653 = vpop.f32.mrb[0].mxu0
        %v654 = vadd.f32 %v520, %v653
        %655 = vmatprep.mubr.f32.mxu0 0.0
        %656 = vmatmul.mubr.f32.gmra.mrb[0].mxu0 %v564
        %v657 = vpop.f32.mrb[0].mxu0
        %v658 = vadd.f32 %v524, %v657
        %v659 = vpop.f32.mrb[0].mxu0
        %v660 = vadd.f32 %v526, %v659
        %661 = vmatprep.mubr.f32.mxu0 0.0
        %662 = vmatmul.mubr.f32.gmra.mrb[0].mxu0 %v567
        %v663 = vpop.f32.mrb[0].mxu0
        %v664 = vadd.f32 %v530, %v663
        %v665 = vpop.f32.mrb[0].mxu0
        %v666 = vadd.f32 %v532, %v665
        %667 = vmatprep.mubr.f32.mxu0 0.0
        %668 = vmatmul.mubr.f32.gmra.mrb[0].mxu0 %v570
        %v669 = vpop.f32.mrb[0].mxu0
        %v670 = vadd.f32 %v536, %v669
        %v671 = vpop.f32.mrb[0].mxu0
        %v672 = vadd.f32 %v538, %v671
        %673 = vmatprep.mubr.f32.mxu0 0.0
        %674 = vmatmul.mubr.f32.gmra.mrb[0].mxu0 %v573
        %v675 = vpop.f32.mrb[0].mxu0
        %v676 = vadd.f32 %v542, %v675
        %v677 = vpop.f32.mrb[0].mxu0
        %v678 = vadd.f32 %v544, %v677
        %679 = vmatprep.mubr.f32.mxu0 0.0
        %680 = vmatmul.mubr.f32.gmra.mrb[0].mxu0 %v576
        %v681 = vpop.f32.mrb[0].mxu0
        %v682 = vadd.f32 %v548, %v681
        %v683 = vpop.f32.mrb[0].mxu0
        %v684 = vadd.f32 %v550, %v683
        %685 = vmatprep.mubr.f32.mxu0 0.0
        %686 = vmatmul.mubr.f32.gmra.mrb[0].mxu0 %v579
        %v687 = vpop.f32.mrb[0].mxu0
        %v688 = vadd.f32 %v554, %v687
        %v689 = vpop.f32.mrb[0].mxu0
        %v690 = vadd.f32 %v556, %v689
        %691 = vdwg.mxu0
        %v692 = vld [vmem:[%s6] sm:$0xff]
        %v693 = vld [vmem:[%s6 + $0x8] sm:$0xff]
        %v694 = vld [vmem:[%s6 + $0x10] sm:$0xff]
        %v695 = vld [vmem:[%s6 + $0x18] sm:$0xff]
        %v696 = vld [vmem:[%s6 + $0x20] sm:$0xff]
        %v697 = vld [vmem:[%s6 + $0x28] sm:$0xff]
        %v698 = vld [vmem:[%s6 + $0x30] sm:$0xf]
        %700 = vset.pattern.permute.xlu0 0
        %701 = vperm.xlu0 %700, %v692
        %v702 = vpop.permute.xlu0 %701
        %705 = vset.pattern.permute.xlu0 0
        %706 = vperm.xlu0 %705, %v693
        %v707 = vpop.permute.xlu0 %706
        %710 = vset.pattern.permute.xlu0 0
        %711 = vperm.xlu0 %710, %v694
        %v712 = vpop.permute.xlu0 %711
        %715 = vset.pattern.permute.xlu0 0
        %716 = vperm.xlu0 %715, %v695
        %v717 = vpop.permute.xlu0 %716
        %720 = vset.pattern.permute.xlu0 0
        %721 = vperm.xlu0 %720, %v696
        %v722 = vpop.permute.xlu0 %721
        %725 = vset.pattern.permute.xlu0 0
        %726 = vperm.xlu0 %725, %v697
        %v727 = vpop.permute.xlu0 %726
        %730 = vset.pattern.permute.xlu0 0
        %731 = vperm.xlu0 %730, %v698
        %v732 = vpop.permute.xlu0 %731
        %v734 = vadd.f32 %v652, %v702
        %v735 = vadd.f32 %v654, %v702
        %v736 = vadd.f32 %v658, %v707
        %v737 = vadd.f32 %v660, %v707
        %v738 = vadd.f32 %v664, %v712
        %v739 = vadd.f32 %v666, %v712
        %v740 = vadd.f32 %v670, %v717
        %v741 = vadd.f32 %v672, %v717
        %v742 = vadd.f32 %v676, %v722
        %v743 = vadd.f32 %v678, %v722
        %v744 = vadd.f32 %v682, %v727
        %v745 = vadd.f32 %v684, %v727
        %v746 = vadd.f32 %v688, %v732
        %v747 = vadd.f32 %v690, %v732
        %v748 = vmax.f32 %v734, 0.0
        %v749 = vmax.f32 %v735, 0.0
        %v750 = vmax.f32 %v736, 0.0
        %v751 = vmax.f32 %v737, 0.0
        %v752 = vmax.f32 %v738, 0.0
        %v753 = vmax.f32 %v739, 0.0
        %v754 = vmax.f32 %v740, 0.0
        %v755 = vmax.f32 %v741, 0.0
        %v756 = vmax.f32 %v742, 0.0
        %v757 = vmax.f32 %v743, 0.0
        %v758 = vmax.f32 %v744, 0.0
        %v759 = vmax.f32 %v745, 0.0
        %v760 = vmax.f32 %v746, 0.0
        %v761 = vmax.f32 %v747, 0.0
        %v762 = vld [vmem:[%s7] sm:$0xf]
        %v763 = vld [vmem:[%s8] sm:$0xf]
        %765 = vset.pattern.permute.xlu0 0
        %766 = vperm.xlu0 %765, %v763
        %v767 = vpop.permute.xlu0 %766
        %vm769 = vcmask 392192
        %v771 = vsel %vm769, %v762, 0
        %773 = vmatprep.subr.mxu0 %v749
        %774 = vmatpush1.msra.mxu0 %v748
        %775 = vmatprep.subr.mxu0 %v751
        %776 = vmatpush1.msra.mxu0 %v750
        %777 = vmatprep.subr.mxu0 %v753
        %778 = vmatpush1.msra.mxu0 %v752
        %779 = vmatprep.subr.mxu0 %v755
        %780 = vmatpush1.msra.mxu0 %v754
        %781 = vmatprep.subr.mxu0 %v757
        %782 = vmatpush1.msra.mxu0 %v756
        %783 = vmatprep.subr.mxu0 %v759
        %784 = vmatpush1.msra.mxu0 %v758
        %785 = vmatprep.subr.mxu0 0.0
        %786 = vmatpush1.msra.mxu0 0.0
        %787 = vmatprep.subr.mxu0 0.0
        %788 = vmatpush1.msra.mxu0 0.0
        %789 = vmatprep.subr.mxu0 0.0
        %790 = vmatpush1.msra.mxu0 0.0
        %791 = vmatprep.subr.mxu0 0.0
        %792 = vmatpush1.msra.mxu0 0.0
        %793 = vmatprep.subr.mxu0 0.0
        %794 = vmatpush1.msra.mxu0 0.0
        %795 = vmatprep.subr.mxu0 0.0
        %796 = vmatpush1.msra.mxu0 0.0
        %797 = vmatprep.subr.mxu0 0.0
        %798 = vmatpush1.msra.mxu0 0.0
        %799 = vmatprep.subr.mxu0 0.0
        %800 = vmatpush1.msra.mxu0 0.0
        %801 = vmatprep.subr.mxu0 0.0
        %802 = vmatpush1.msra.mxu0 0.0
        %803 = vmatprep.subr.mxu0 0.0
        %804 = vmatpush1.msra.mxu0 0.0
        %805 = vmatprep.subr.mxu0 0.0
        %806 = vmatpush1.msra.mxu0 0.0
        %807 = vmatprep.subr.mxu0 0.0
        %808 = vmatpush1.msra.mxu0 0.0
        %809 = vmatprep.subr.mxu0 0.0
        %810 = vmatpush1.msra.mxu0 0.0
        %811 = vmatprep.subr.mxu0 0.0
        %812 = vmatpush1.msra.mxu0 0.0
        %813 = vmatprep.subr.mxu0 0.0
        %814 = vmatpush1.msra.mxu0 0.0
        %815 = vmatprep.subr.mxu0 0.0
        %816 = vmatpush1.msra.mxu0 0.0
        %817 = vmatprep.subr.mxu0 0.0
        %818 = vmatpush1.msra.mxu0 0.0
        %819 = vmatprep.subr.mxu0 0.0
        %820 = vmatpush1.msra.mxu0 0.0
        %821 = vmatprep.subr.mxu0 0.0
        %822 = vmatpush1.msra.mxu0 0.0
        %823 = vmatprep.subr.mxu0 0.0
        %824 = vmatpush1.msra.mxu0 0.0
        %825 = vmatprep.subr.mxu0 0.0
        %826 = vmatpush1.msra.mxu0 0.0
        %827 = vmatprep.subr.mxu0 0.0
        %828 = vmatpush1.msra.mxu0 0.0
        %829 = vmatprep.subr.mxu0 0.0
        %830 = vmatpush1.msra.mxu0 0.0
        %831 = vmatprep.subr.mxu0 0.0
        %832 = vmatpush1.msra.mxu0 0.0
        %833 = vmatprep.subr.mxu0 0.0
        %834 = vmatpush1.msra.mxu0 0.0
        %835 = vmatprep.subr.mxu0 0.0
        %836 = vmatpush1.msra.mxu0 0.0
        %837 = vmatprep.mubr.f32.mxu0 0.0
        %838 = vmatmul.mubr.f32.gmra.mrb[0].mxu0 %v771
        %v839 = vpop.f32.mrb[0].mxu0
        %v840 = vadd.f32 %v767, %v839
        %v841 = vpop.f32.mrb[0].mxu0
        %v842 = vadd.f32 %v767, %v841
        %843 = vdwg.mxu0
        %v844 = vld [vmem:[%s1] ss:$2 sm:$0x3]
        %s845 = scalar_lea.vmem %s1, 1
        %v846 = vld [vmem:[%s845] ss:$2 sm:$0x3]
        %v848 = vlaneseq
        %v849 = vshrl.u32 %v848, 7
        %v850 = vsub.s32 0, %v849
        %v851 = vrot.slane %v844, %v850
        %v852 = vlaneseq
        %v853 = vshrl.u32 %v852, 7
        %v854 = vsub.s32 1, %v853
        %v855 = vrot.slane %v844, %v854
        %856 = vrot.lane.b32.xlu0 %v851, 111
        %v857 = vpop.permute.xlu0 %856
        %858 = vrot.lane.b32.xlu0 %v855, 111
        %v859 = vpop.permute.xlu0 %858
        %vm860 = vcmask 908288
        %v861 = vsel %vm860, %v857, %v859
        %v865 = vmul.f32 %v857, 0.0
        %v866 = vmul.f32 %v840, %v861
        %v867 = vmul.f32 %v842, %v859
        %v869 = vlaneseq
        %v870 = vshrl.u32 %v869, 7
        %v871 = vsub.s32 0, %v870
        %v872 = vrot.slane %v846, %v871
        %v873 = vlaneseq
        %v874 = vshrl.u32 %v873, 7
        %v875 = vsub.s32 1, %v874
        %v876 = vrot.slane %v846, %v875
        %877 = vrot.lane.b32.xlu0 %v872, 113
        %v878 = vpop.permute.xlu0 %877
        %879 = vrot.lane.b32.xlu0 %v876, 113
        %v880 = vpop.permute.xlu0 %879
        %vm881 = vcmask 924672
        %v882 = vsel %vm881, %v878, %v880
        %v886 = vmul.f32 %v878, 0.0
        %v887 = vmul.f32 %v840, %v882
        %v888 = vmul.f32 %v842, %v880
        %889 = vrot.lane.b32.xlu0 %v851, 127
        %v890 = vpop.permute.xlu0 %889
        %891 = vrot.lane.b32.xlu0 %v855, 127
        %v892 = vpop.permute.xlu0 %891
        %vm893 = vcmask 1039360
        %v894 = vsel %vm893, %v890, %v892
        %v898 = vmul.f32 %v890, 0.0
        %v899 = vmul.f32 %v840, %v894
        %v900 = vmul.f32 %v842, %v892
        %901 = vrot.lane.b32.xlu0 %v872, 1
        %v902 = vpop.permute.xlu0 %901
        %903 = vrot.lane.b32.xlu0 %v876, 1
        %v904 = vpop.permute.xlu0 %903
        %vm905 = vcmask 7168
        %v906 = vsel %vm905, %v902, %v904
        %v910 = vmul.f32 %v840, %v902
        %v911 = vmul.f32 %v842, %v906
        %v912 = vmul.f32 %v904, 0.0
        %913 = vrot.lane.b32.xlu0 %v851, 15
        %v914 = vpop.permute.xlu0 %913
        %915 = vrot.lane.b32.xlu0 %v855, 15
        %v916 = vpop.permute.xlu0 %915
        %vm917 = vcmask 121856
        %v918 = vsel %vm917, %v914, %v916
        %v922 = vmul.f32 %v840, %v914
        %v923 = vmul.f32 %v842, %v918
        %v924 = vmul.f32 %v916, 0.0
        %925 = vrot.lane.b32.xlu0 %v872, 17
        %v926 = vpop.permute.xlu0 %925
        %927 = vrot.lane.b32.xlu0 %v876, 17
        %v928 = vpop.permute.xlu0 %927
        %vm929 = vcmask 138240
        %v930 = vsel %vm929, %v926, %v928
        %v934 = vmul.f32 %v840, %v926
        %v935 = vmul.f32 %v842, %v930
        %v936 = vmul.f32 %v928, 0.0
        %v940 = vrot.slane 0.0, 4
        %v941 = vrot.slane %v840, 4
        %v942 = vrot.slane %v842, 4
        %943 = vrot.lane.b32.xlu0 %v940, 127
        %v944 = vpop.permute.xlu0 %943
        %945 = vrot.lane.b32.xlu0 %v941, 127
        %v946 = vpop.permute.xlu0 %945
        %947 = vrot.lane.b32.xlu0 %v942, 127
        %v948 = vpop.permute.xlu0 %947
        %v949 = vsel %vm893, %v944, %v946
        %v950 = vsel %vm893, %v946, %v948
        %957 = vrot.lane.b32.xlu0 %v886, 126
        %v958 = vpop.permute.xlu0 %957
        %959 = vrot.lane.b32.xlu0 %v887, 126
        %v960 = vpop.permute.xlu0 %959
        %961 = vrot.lane.b32.xlu0 %v888, 126
        %v962 = vpop.permute.xlu0 %961
        %vm963 = vcmask 1031168
        %v964 = vsel %vm963, %v958, %v960
        %v965 = vsel %vm963, %v960, %v962
        %v972 = vrot.slane %v898, 4
        %v973 = vrot.slane %v899, 4
        %v974 = vrot.slane %v900, 4
        %975 = vrot.lane.b32.xlu0 %v972, 112
        %v976 = vpop.permute.xlu0 %975
        %977 = vrot.lane.b32.xlu0 %v973, 112
        %v978 = vpop.permute.xlu0 %977
        %979 = vrot.lane.b32.xlu0 %v974, 112
        %v980 = vpop.permute.xlu0 %979
        %vm981 = vcmask 916480
        %v982 = vsel %vm981, %v976, %v978
        %v983 = vsel %vm981, %v978, %v980
        %987 = vrot.lane.b32.xlu0 %v840, 111
        %v988 = vpop.permute.xlu0 %987
        %989 = vrot.lane.b32.xlu0 %v842, 111
        %v990 = vpop.permute.xlu0 %989
        %v991 = vsel %vm860, %v988, %v990
        %v998 = vrot.slane %v910, 4
        %v999 = vrot.slane %v911, 4
        %v1000 = vrot.slane %v912, 4
        %1001 = vrot.lane.b32.xlu0 %v998, 110
        %v1002 = vpop.permute.xlu0 %1001
        %1003 = vrot.lane.b32.xlu0 %v999, 110
        %v1004 = vpop.permute.xlu0 %1003
        %1005 = vrot.lane.b32.xlu0 %v1000, 110
        %v1006 = vpop.permute.xlu0 %1005
        %vm1007 = vcmask 900096
        %v1008 = vsel %vm1007, %v1002, %v1004
        %v1009 = vsel %vm1007, %v1004, %v1006
        %1016 = vrot.lane.b32.xlu0 %v922, 96
        %v1017 = vpop.permute.xlu0 %1016
        %1018 = vrot.lane.b32.xlu0 %v923, 96
        %v1019 = vpop.permute.xlu0 %1018
        %1020 = vrot.lane.b32.xlu0 %v924, 96
        %v1021 = vpop.permute.xlu0 %1020
        %vm1022 = vcmask 785408
        %v1023 = vsel %vm1022, %v1017, %v1019
        %v1024 = vsel %vm1022, %v1019, %v1021
        %1028 = vrot.lane.b32.xlu0 %v941, 95
        %v1029 = vpop.permute.xlu0 %1028
        %1030 = vrot.lane.b32.xlu0 %v942, 95
        %v1031 = vpop.permute.xlu0 %1030
        %1032 = vrot.lane.b32.xlu0 %v940, 95
        %v1033 = vpop.permute.xlu0 %1032
        %vm1034 = vcmask 777216
        %v1035 = vsel %vm1034, %v1029, %v1031
        %v1036 = vsel %vm1034, %v1031, %v1033
        %1043 = vrot.lane.b32.xlu0 %v934, 94
        %v1044 = vpop.permute.xlu0 %1043
        %1045 = vrot.lane.b32.xlu0 %v935, 94
        %v1046 = vpop.permute.xlu0 %1045
        %1047 = vrot.lane.b32.xlu0 %v936, 94
        %v1048 = vpop.permute.xlu0 %1047
        %vm1049 = vcmask 769024
        %v1050 = vsel %vm1049, %v1044, %v1046
        %v1051 = vsel %vm1049, %v1046, %v1048
        %v1052 = vsel %vm446, %v865, %v949
        %v1053 = vsel %vm446, %v866, %v950
        %v1054 = vsel %vm446, %v867, %v948
        %v1055 = vsel %vm446, %v964, %v982
        %v1056 = vsel %vm446, %v965, %v983
        %v1057 = vsel %vm446, %v962, %v980
        %v1058 = vsel %vm446, %v988, %v1002
        %v1059 = vsel %vm446, %v991, %v1008
        %v1060 = vsel %vm446, %v990, %v1009
        %v1061 = vsel %vm446, %v1017, %v1029
        %v1062 = vsel %vm446, %v1023, %v1035
        %v1063 = vsel %vm446, %v1024, %v1036
        %v1064 = vld [vmem:[%s9] sm:$0xf]
        %v1065 = vld [vmem:[%s10] sm:$0xf]
        %1067 = vset.pattern.permute.xlu0 0
        %1068 = vperm.xlu0 %1067, %v1065
        %v1069 = vpop.permute.xlu0 %1068
        %1083 = vrot.lane.b32.xlu0 %v1052, 17
        %v1084 = vpop.permute.xlu0 %1083
        %1085 = vrot.lane.b32.xlu0 %v1053, 17
        %v1086 = vpop.permute.xlu0 %1085
        %1087 = vrot.lane.b32.xlu0 %v1054, 17
        %v1088 = vpop.permute.xlu0 %1087
        %1089 = vrot.lane.b32.xlu0 %v1055, 17
        %v1090 = vpop.permute.xlu0 %1089
        %1091 = vrot.lane.b32.xlu0 %v1056, 17
        %v1092 = vpop.permute.xlu0 %1091
        %1093 = vrot.lane.b32.xlu0 %v1057, 17
        %v1094 = vpop.permute.xlu0 %1093
        %1095 = vrot.lane.b32.xlu0 %v1058, 17
        %v1096 = vpop.permute.xlu0 %1095
        %1097 = vrot.lane.b32.xlu0 %v1059, 17
        %v1098 = vpop.permute.xlu0 %1097
        %1099 = vrot.lane.b32.xlu0 %v1060, 17
        %v1100 = vpop.permute.xlu0 %1099
        %1101 = vrot.lane.b32.xlu0 %v1061, 17
        %v1102 = vpop.permute.xlu0 %1101
        %1103 = vrot.lane.b32.xlu0 %v1062, 17
        %v1104 = vpop.permute.xlu0 %1103
        %1105 = vrot.lane.b32.xlu0 %v1063, 17
        %v1106 = vpop.permute.xlu0 %1105
        %1107 = vrot.lane.b32.xlu0 %v1044, 17
        %v1108 = vpop.permute.xlu0 %1107
        %1109 = vrot.lane.b32.xlu0 %v1050, 17
        %v1110 = vpop.permute.xlu0 %1109
        %1111 = vrot.lane.b32.xlu0 %v1051, 17
        %v1112 = vpop.permute.xlu0 %1111
        %v1113 = vsel %vm929, %v1084, %v1086
        %v1114 = vsel %vm929, %v1086, %v1088
        %v1115 = vsel %vm929, %v1090, %v1092
        %v1116 = vsel %vm929, %v1092, %v1094
        %v1117 = vsel %vm929, %v1096, %v1098
        %v1118 = vsel %vm929, %v1098, %v1100
        %v1119 = vsel %vm929, %v1102, %v1104
        %v1120 = vsel %vm929, %v1104, %v1106
        %v1121 = vsel %vm929, %v1108, %v1110
        %v1122 = vsel %vm929, %v1110, %v1112
        %vm1131 = vcmask 293888
        %v1133 = vsel %vm1131, %v1064, 0
        %v1135 = vsel %vm446, %v1121, 0
        %v1137 = vsel %vm446, %v1122, 0
        %1139 = vmatprep.subr.mxu0 %v1114
        %1140 = vmatpush1.msra.mxu0 %v1113
        %1141 = vmatprep.subr.mxu0 %v1116
        %1142 = vmatpush1.msra.mxu0 %v1115
        %1143 = vmatprep.subr.mxu0 %v1118
        %1144 = vmatpush1.msra.mxu0 %v1117
        %1145 = vmatprep.subr.mxu0 %v1120
        %1146 = vmatpush1.msra.mxu0 %v1119
        %1147 = vmatprep.subr.mxu0 %v1137
        %1148 = vmatpush1.msra.mxu0 %v1135
        %1149 = vmatprep.subr.mxu0 0.0
        %1150 = vmatpush1.msra.mxu0 0.0
        %1151 = vmatprep.subr.mxu0 0.0
        %1152 = vmatpush1.msra.mxu0 0.0
        %1153 = vmatprep.subr.mxu0 0.0
        %1154 = vmatpush1.msra.mxu0 0.0
        %1155 = vmatprep.subr.mxu0 0.0
        %1156 = vmatpush1.msra.mxu0 0.0
        %1157 = vmatprep.subr.mxu0 0.0
        %1158 = vmatpush1.msra.mxu0 0.0
        %1159 = vmatprep.subr.mxu0 0.0
        %1160 = vmatpush1.msra.mxu0 0.0
        %1161 = vmatprep.subr.mxu0 0.0
        %1162 = vmatpush1.msra.mxu0 0.0
        %1163 = vmatprep.subr.mxu0 0.0
        %1164 = vmatpush1.msra.mxu0 0.0
        %1165 = vmatprep.subr.mxu0 0.0
        %1166 = vmatpush1.msra.mxu0 0.0
        %1167 = vmatprep.subr.mxu0 0.0
        %1168 = vmatpush1.msra.mxu0 0.0
        %1169 = vmatprep.subr.mxu0 0.0
        %1170 = vmatpush1.msra.mxu0 0.0
        %1171 = vmatprep.subr.mxu0 0.0
        %1172 = vmatpush1.msra.mxu0 0.0
        %1173 = vmatprep.subr.mxu0 0.0
        %1174 = vmatpush1.msra.mxu0 0.0
        %1175 = vmatprep.subr.mxu0 0.0
        %1176 = vmatpush1.msra.mxu0 0.0
        %1177 = vmatprep.subr.mxu0 0.0
        %1178 = vmatpush1.msra.mxu0 0.0
        %1179 = vmatprep.subr.mxu0 0.0
        %1180 = vmatpush1.msra.mxu0 0.0
        %1181 = vmatprep.subr.mxu0 0.0
        %1182 = vmatpush1.msra.mxu0 0.0
        %1183 = vmatprep.subr.mxu0 0.0
        %1184 = vmatpush1.msra.mxu0 0.0
        %1185 = vmatprep.subr.mxu0 0.0
        %1186 = vmatpush1.msra.mxu0 0.0
        %1187 = vmatprep.subr.mxu0 0.0
        %1188 = vmatpush1.msra.mxu0 0.0
        %1189 = vmatprep.subr.mxu0 0.0
        %1190 = vmatpush1.msra.mxu0 0.0
        %1191 = vmatprep.subr.mxu0 0.0
        %1192 = vmatpush1.msra.mxu0 0.0
        %1193 = vmatprep.subr.mxu0 0.0
        %1194 = vmatpush1.msra.mxu0 0.0
        %1195 = vmatprep.subr.mxu0 0.0
        %1196 = vmatpush1.msra.mxu0 0.0
        %1197 = vmatprep.subr.mxu0 0.0
        %1198 = vmatpush1.msra.mxu0 0.0
        %1199 = vmatprep.subr.mxu0 0.0
        %1200 = vmatpush1.msra.mxu0 0.0
        %1201 = vmatprep.subr.mxu0 0.0
        %1202 = vmatpush1.msra.mxu0 0.0
        %1203 = vmatprep.mubr.f32.mxu0 0.0
        %1204 = vmatmul.mubr.f32.gmra.mrb[0].mxu0 %v1133
        %v1205 = vpop.f32.mrb[0].mxu0
        %v1206 = vadd.f32 %v1069, %v1205
        %v1207 = vpop.f32.mrb[0].mxu0
        %v1208 = vadd.f32 %v1069, %v1207
        %1209 = vdwg.mxu0
        %s1210 = sld [smem:[#allocation2]]
        %v1211 = vstv %s1210
        %v1212 = vmul.f32 %v1211, %v760
        %v1213 = vmul.f32 %v1211, %v761
        %v1214 = vadd.f32 %v1206, %v1212
        %v1215 = vadd.f32 %v1208, %v1213
        %v1218 = vcombine.low %v1214, %v1215
        %1220 = vst [vmem:[%s395] sm:$0xff] %v1218
        %s1221 = sand.u32 %s275, 1
        %s1222 = scalar_lea.sflag [#allocation4], %s1221
        %s1223 = sand.u32 %s275, 1
        %s1224 = smul.addr %s1223, 8
        %s1225 = scalar_lea.vmem [#allocation3], %s1224
        // Predicated region
        $region65: #{tpu_custom_call.1} parent=63 // pred_check
          %p1226 = pneg %p285
        $region66: #{tpu_custom_call.1} parent=63 // pred_check_branch
          %1228 = sbr.rel (%p1226) target = $region68
        $region67: #{tpu_custom_call.1} parent=63 // pred_region
          %s1230 = ssub.s32 128, 128
          %1231 = vsyncadd %s1222, %s1230
          %s1232 = smul.addr %s26, 2
          %s1233 = smul.addr %s1232, 64
          %s1234 = scalar_lea.hbm %s11, %s1233
          %s1236 = sshll.u32 %s1225, 4
          %s1237 = int_to_ptr.vmem [resolvable:$true] %s1236
          %1239 = dma.vmem_to_hbm [thread:$0]  %s1237, 128, %s1234, %s1222
        $region68: #{tpu_custom_call.1} parent=63 // pred_fallthru
          _
      $region64: #{tpu_custom_call.1} parent=5 // pred_fallthru
        _
      %p1240 = scmp.le.s32.totalorder 2, %s21
      // Predicated region
      $region69: #{tpu_custom_call.1} parent=5 // pred_check
        %p1241 = pneg %p1240
      $region70: #{tpu_custom_call.1} parent=5 // pred_check_branch
        %1243 = sbr.rel (%p1241) target = $region72
      $region71: #{tpu_custom_call.1} parent=5 // pred_region
        %s1244 = ssub.s32 %s21, 2
        // Predicated region
        $region73: #{tpu_custom_call.1} parent=71 // pred_check
          %p1245 = pneg %p291
        $region74: #{tpu_custom_call.1} parent=71 // pred_check_branch
          %1247 = sbr.rel (%p1245) target = $region76
        $region75: #{tpu_custom_call.1} parent=71 // pred_region
          %s1248 = sand.u32 %s276, 1
          %s1249 = scalar_lea.sflag [#allocation4], %s1248
          %s1250 = sand.u32 %s276, 1
          %s1251 = smul.addr %s1250, 8
          %s1252 = scalar_lea.vmem [#allocation3], %s1251
          %1253 = dma.done %s1249, 128
        $region76: #{tpu_custom_call.1} parent=71 // pred_fallthru
          _
      $region72: #{tpu_custom_call.1} parent=5 // pred_fallthru
        _
    $region6: #{tpu_custom_call.1} parent=1 // loop_footer
      %s25 = sadd.s32 1, %s21
    $region7: #{tpu_custom_call.1} parent=1 // loop_footer_branch
      %20 = sbr.rel target = $region3
    $region8: #{tpu_custom_call.1} parent=1 // loop_exit
      _
    %1254 = vsyncpa [#allocation4], 1
    %s1255 = scalar_lea.sflag [#allocation4], 1
    %1256 = vsyncpa %s1255, 1

</llo_original>
